<compile_context>
chip_gen: v7x
topology: tpu7x:2x2x1
jax: 0.10.0
libtpu: 0.0.40
codegen_flags: <defaults>
</compile_context>

<pallas_src>
import math

import jax
import jax.numpy as jnp
from jax.experimental import pallas as pl
from jax.experimental.pallas import tpu as pltpu


def _copy_kernel(x_ref, o_ref):
    o_ref[...] = x_ref[...]


def _sublane(itemsize):
    # Sublane packing: f32 -> 8, bf16 -> 16, int8 -> 32.
    return max(8, 32 // max(1, itemsize))


def _pick_lane(total):
    """Largest lane width in {512, 256, 128} that divides the element count."""
    for lane in (512, 256, 128):
        if total % lane == 0:
            return lane
    return None


def _pick_row_tile(rows, lane, itemsize, target_block_bytes=4 << 20):
    """Rows per block: multiple of sublane packing, ~target_block_bytes,
    capped so the grid has >= 2 steps whenever possible (megacore on v7x)."""
    sub = _sublane(itemsize)
    if rows <= sub:
        return rows  # full-extent block: always legal, grid = 1
    row_bytes = lane * itemsize
    tn = max(sub, (target_block_bytes // row_bytes) // sub * sub)
    # Cap at ~half the rows (rounded to the sublane multiple) -> >= 2 grid steps.
    half = max(sub, ((rows + 1) // 2) // sub * sub)
    tn = min(tn, half)
    if tn >= rows:
        tn = rows
    return tn


def _materialized_copy_2d(x2):
    """Identity copy of a 2-D array, tiled along contiguous rows."""
    rows, lane = x2.shape
    itemsize = jnp.dtype(x2.dtype).itemsize
    tn = _pick_row_tile(rows, lane, itemsize)
    grid = (pl.cdiv(rows, tn),)
    spec = pl.BlockSpec((tn, lane), lambda i: (i, 0))
    nbytes = rows * lane * itemsize
    return pl.pallas_call(
        _copy_kernel,
        out_shape=jax.ShapeDtypeStruct((rows, lane), x2.dtype),
        grid_spec=pltpu.PrefetchScalarGridSpec(
            num_scalar_prefetch=0,
            grid=grid,
            in_specs=[spec],
            out_specs=spec,
        ),
        compiler_params=pltpu.CompilerParams(
            dimension_semantics=("parallel",),
            vmem_limit_bytes=48 << 20,
        ),
        cost_estimate=pl.CostEstimate(
            flops=0, transcendentals=0, bytes_accessed=2 * nbytes),
    )(x2)


def flatten(x, materialize=False):
    """Pallas equivalent of PyTorch Flatten: (N, d1, ...) -> (N, prod(d_i)).

    Default path is a metadata-only reshape (zero HBM traffic), matching
    torch .view(-1, K).  Set materialize=True to force a physical copy through
    the Pallas kernel.
    """
    N = x.shape[0]
    K = math.prod(x.shape[1:]) if x.ndim > 1 else 1

    if not materialize:
        return x.reshape(N, K)

    total = N * K
    lane = _pick_lane(total)
    if lane is not None:
        # Contiguous lane-dense view of the same buffer: (total // lane, lane).
        flat = x.reshape(total // lane, lane)
        out = _materialized_copy_2d(flat)
        return out.reshape(N, K)

    # Ragged lane width: keep K full-extent (legal under the (8,128) rule),
    # tile the row dimension so the pipeline still double-buffers.
    flat = x.reshape(N, K)
    return _materialized_copy_2d(flat)


if __name__ == "__main__":
    key = jax.random.PRNGKey(0)
    # Small shapes consistent with the module: batch=2, channels=4, spatial=16.
    x = jax.random.normal(key, (2, 4, 16, 16), jnp.float32)

    # Reference: PyTorch x.view(-1, prod(shape[1:])) == row-major reshape.
    ref = x.reshape(x.shape[0], -1)

    # Default (fast) path: metadata-only reshape, no kernel launch.
    out_view = jax.block_until_ready(flatten(x))
    # Materialized path: exercises the Pallas copy kernel once.
    out_copy = jax.block_until_ready(flatten(x, materialize=True))

    assert out_view.shape == (2, 4 * 16 * 16), out_view.shape
    assert out_copy.shape == (2, 4 * 16 * 16), out_copy.shape
    assert out_copy.dtype == x.dtype
    assert bool(jnp.array_equal(out_view, ref))
    assert bool(jnp.array_equal(out_copy, ref))
    assert bool(jnp.all(jnp.isfinite(out_copy)))
    print("KERNEL_OK")
</pallas_src>

<mosaic_0001>
module attributes {stable_mosaic.version = 11 : i64} {
  func.func @_copy_kernel(%arg0: i32, %arg1: memref<4x512xf32, #tpu.memory_space<vmem>>, %arg2: memref<4x512xf32, #tpu.memory_space<vmem>>) attributes {dimension_semantics = [#tpu.dimension_semantics<parallel>], iteration_bounds = array<i64: 1>, scalar_prefetch = 0 : i64, scratch_operands = 0 : i64, tpu.core_type = #tpu.core_type<tc>, window_params = [{transform_indices = @transform_0, window_bounds = array<i64: 4, 512>}, {transform_indices = @transform_1, window_bounds = array<i64: 4, 512>}]} {
    %c0 = arith.constant 0 : index
    %c0_0 = arith.constant 0 : index
    %0 = vector.load %arg1[%c0, %c0_0] : memref<4x512xf32, #tpu.memory_space<vmem>>, vector<4x512xf32>
    %c0_1 = arith.constant 0 : index
    %c0_2 = arith.constant 0 : index
    %1 = vector.load %arg2[%c0_1, %c0_2] : memref<4x512xf32, #tpu.memory_space<vmem>>, vector<4x512xf32>
    tpu.vector_store %arg2[%c0_1, %c0_2], %0 {strides = array<i32>} : memref<4x512xf32, #tpu.memory_space<vmem>>, vector<4x512xf32>,
    return
  }
  func.func @transform_0(%arg0: i32) -> (i32, i32) {
    %c0_i32 = arith.constant 0 : i32
    %c0_i32_0 = arith.constant 0 : i32
    return %arg0, %c0_i32 : i32, i32
  }
  func.func @transform_1(%arg0: i32) -> (i32, i32) {
    %c0_i32 = arith.constant 0 : i32
    %c0_i32_0 = arith.constant 0 : i32
    return %arg0, %c0_i32 : i32, i32
  }
}

</mosaic_0001>

<llo_original>
// kernel: tpu_custom_call.1
$region0: #{tpu_custom_call.1}
  #allocation0 [shape = 'u32[]', space=smem, size = 0x4, offset = 0x4, fixed_abs, tag = 'smem constant byte address 0x4 - core index']
  #allocation1 [shape = 'u32[144,128]{1,0:T(1,128)}', space=vmem, size = 0x12000, scoped, tag = 'internal scratch']
  %s0 = inlined_call_operand.hbm [shape: f32[4,512], index: 0, kind: input, shape index: {}]
  %s1 = inlined_call_operand.hbm [shape: f32[4,512], index: 1, kind: output, shape index: {}]
  %s2 = sld [smem:[#allocation0]]
  $region18: #{tpu_custom_call.1} parent=0
    _
  %s4 = ssub.s32 1, %s2
  %s5 = scalar_select 0, %s4, %s2
  $region1: #{tpu_custom_call.1} parent=0
    #allocation2 [shape = 'u8[8192]{0}', space=vmem, size = 0x2000, scoped, tag = 'input window, operand 0, single buffered']
    #allocation3 [shape = 's32[1]{0}', space=sflag, size = 0x4, scoped, tag = 'scoped memory for tpu_custom_call.1']
    #allocation4 [shape = 's32[1]{0}', space=sflag, size = 0x4, scoped, tag = 'scoped memory for tpu_custom_call.1']
    #allocation5 [shape = 'u8[8192]{0}', space=vmem, size = 0x2000, scoped, tag = 'output window, operand 0, single buffered']
    %6 = vsyncpa [#allocation3], 0
    %7 = vsyncpa [#allocation4], 0
    // Predicated region
    $region2: #{tpu_custom_call.1} parent=1 // pred_check
      _
    $region3: #{tpu_custom_call.1} parent=1 // pred_check_branch
      %9 = sbr.rel (0) target = $region5
    $region4: #{tpu_custom_call.1} parent=1 // pred_region
      %s11 = ssub.s32 256, 256
      %12 = vsyncadd [#allocation3], %s11
      %s14 = sshll.u32 [#allocation2], 4
      %s15 = int_to_ptr.vmem [resolvable:$true] %s14
      %17 = dma.hbm_to_vmem [thread:$0]  %s0, 256, %s15, [#allocation3]
    $region5: #{tpu_custom_call.1} parent=1 // pred_fallthru
      _
    // Predicated region
    $region6: #{tpu_custom_call.1} parent=1 // pred_check
      _
    $region7: #{tpu_custom_call.1} parent=1 // pred_check_branch
      %19 = sbr.rel (0) target = $region9
    $region8: #{tpu_custom_call.1} parent=1 // pred_region
      %20 = dma.done [#allocation3], 256
    $region9: #{tpu_custom_call.1} parent=1 // pred_fallthru
      _
    %v21 = vld [vmem:[#allocation2] sm:$0xff]
    %v22 = vld [vmem:[#allocation2 + $0x8] sm:$0xff]
    %23 = vst [vmem:[#allocation5] sm:$0xff] %v21
    %24 = vst [vmem:[#allocation5 + $0x8] sm:$0xff] %v22
    // Predicated region
    $region10: #{tpu_custom_call.1} parent=1 // pred_check
      _
    $region11: #{tpu_custom_call.1} parent=1 // pred_check_branch
      %26 = sbr.rel (0) target = $region13
    $region12: #{tpu_custom_call.1} parent=1 // pred_region
      %s28 = ssub.s32 256, 256
      %29 = vsyncadd [#allocation4], %s28
      %s31 = sshll.u32 [#allocation5], 4
      %s32 = int_to_ptr.vmem [resolvable:$true] %s31
      %34 = dma.vmem_to_hbm [thread:$0]  %s32, 256, %s1, [#allocation4]
    $region13: #{tpu_custom_call.1} parent=1 // pred_fallthru
      _
    // Predicated region
    $region14: #{tpu_custom_call.1} parent=1 // pred_check
      _
    $region15: #{tpu_custom_call.1} parent=1 // pred_check_branch
      %36 = sbr.rel (0) target = $region17
    $region16: #{tpu_custom_call.1} parent=1 // pred_region
      %37 = dma.done [#allocation4], 256
    $region17: #{tpu_custom_call.1} parent=1 // pred_fallthru
      _
    %38 = vsyncpa [#allocation3], 1
    %39 = vsyncpa [#allocation4], 1

</llo_original>
